<compile_context>
chip_gen: v5e
topology: v5e:2x2
jax: 0.10.0
libtpu: 0.0.40
codegen_flags: <defaults>
</compile_context>

<pallas_src>
import jax
import jax.numpy as jnp
from jax import lax
from jax.experimental import pallas as pl
from jax.experimental.pallas import tpu as pltpu

F_IN = 13
F_OUT = 1


def _round_up(a: int, m: int) -> int:
    return ((a + m - 1) // m) * m


def _linear_kernel(x_ref, w_ref, b_ref, o_ref):
    """One batch tile of Linear(13, 1).

    x_ref: [TB, F_IN]  VMEM   (batch tile; batch on sublanes)
    w_ref: [1,  F_IN]  VMEM   (resident across the grid)
    b_ref: [1, 1]      SMEM   (scalar bias)
    o_ref: [1, 1, TB]  VMEM   (lane-dense: batch maps to lanes)
    """
    # NT-form contraction over F_IN of both operands -> [1, TB] directly in the
    # lane-dense orientation (no explicit transpose of either operand here).
    y = lax.dot_general(
        w_ref[...],
        x_ref[...],
        dimension_numbers=(((1,), (1,)), ((), ())),
        preferred_element_type=jnp.float32,
    )                                    # [1, TB] f32
    y = y + b_ref[0, 0]                  # scalar bias read from SMEM
    o_ref[0] = y.astype(o_ref.dtype)     # full-lane stores into [1, TB]


def net_forward(x, weight, bias, *, block_b=32768, min_pallas_batch=4096):
    """Pallas equivalent of Net.forward: x @ weight.T + bias.

    x:      [B, 13] float32
    weight: [1, 13] float32   (torch.nn.Linear(13, 1).weight layout)
    bias:   [1]     float32   (torch.nn.Linear(13, 1).bias layout)
    returns [B, 1]  float32
    """
    B, f_in = x.shape
    f_out, f_in_w = weight.shape
    assert f_in == f_in_w == F_IN and f_out == F_OUT

    # Small-batch fast path: a sub-microsecond op does not justify a
    # pallas_call launch; let XLA fuse it (review item 7).
    if B < min_pallas_batch:
        return (x @ weight.T + bias.reshape(1, F_OUT)).astype(x.dtype)

    # --- batch tile selection -------------------------------------------
    # * lane dim (last dim of the output block) is a multiple of 128 so the
    #   stores are unmasked full-lane vst;
    # * prefer >= 2 grid steps for medium B so the "parallel" axis can split
    #   across v7x's two TensorCores;
    # * cap at block_b (default 32768) so the double-buffered footprint stays
    #   well under v7x's 64 MiB physical VMEM.
    half = _round_up((B + 1) // 2, 128)
    tb = min(block_b, max(128, half))
    b_padded = _round_up(B, tb)
    x_p = x if b_padded == B else jnp.pad(x, ((0, b_padded - B), (0, 0)))
    n_tiles = b_padded // tb

    bias_smem = bias.reshape(1, 1).astype(jnp.float32)

    # --- VMEM budget (per grid step, double-buffered) ---------------------
    # x tile   : (tb, 13) f32, lane-padded to 128     -> tb * 512 B / buffer
    # out tile : (1, 1, tb) f32, sublane-padded to 8  -> tb * 32  B / buffer
    # weight   : (1, 13) padded to (8, 128)           -> ~4 KiB (negligible)
    x_tile_bytes = tb * 128 * 4
    out_tile_bytes = tb * 8 * 4
    per_step_bytes = 2 * (x_tile_bytes + out_tile_bytes)
    vmem_limit = min(64 * 1024 * 1024,
                     max(32 * 1024 * 1024, per_step_bytes + (8 << 20)))

    cost = pl.CostEstimate(
        flops=2 * b_padded * F_IN * F_OUT,
        transcendentals=0,
        bytes_accessed=4 * (b_padded * F_IN + F_IN * F_OUT + F_OUT + b_padded),
    )

    out3 = pl.pallas_call(
        _linear_kernel,
        out_shape=jax.ShapeDtypeStruct((n_tiles, 1, tb), x.dtype),
        grid=(n_tiles,),
        in_specs=[
            pl.BlockSpec((tb, F_IN), lambda i: (i, 0)),          # x batch tile
            pl.BlockSpec((F_OUT, F_IN), lambda i: (0, 0)),       # weight (resident)
            pl.BlockSpec(memory_space=pltpu.MemorySpace.SMEM),   # bias scalar
        ],
        out_specs=pl.BlockSpec((1, 1, tb), lambda i: (i, 0, 0)),
        compiler_params=pltpu.CompilerParams(
            dimension_semantics=("parallel",),
            vmem_limit_bytes=vmem_limit,
        ),
        cost_estimate=cost,
    )(x_p, weight, bias_smem)

    # (n_tiles, 1, TB) row-major == batch order -> free reshape + trim padding.
    return out3.reshape(b_padded, 1)[:B]


if __name__ == "__main__":
    key = jax.random.PRNGKey(0)
    k_x, k_w, k_b = jax.random.split(key, 3)

    # Deterministic param init, mirroring torch.nn.Linear's
    # uniform(-1/sqrt(fan_in), 1/sqrt(fan_in)) scheme.
    bound = 1.0 / jnp.sqrt(jnp.float32(F_IN))
    weight = jax.random.uniform(k_w, (F_OUT, F_IN), jnp.float32, -bound, bound)
    bias = jax.random.uniform(k_b, (F_OUT,), jnp.float32, -bound, bound)

    # Small batch through the Pallas path (min_pallas_batch=0 forces the
    # kernel; production default would route this through plain XLA).
    B = 8
    x = jax.random.normal(k_x, (B, F_IN), jnp.float32)
    out = net_forward(x, weight, bias, min_pallas_batch=0)
    jax.block_until_ready(out)
    ref = x @ weight.T + bias
    assert out.shape == (B, F_OUT)
    assert jnp.allclose(out, ref, atol=1e-5, rtol=1e-5)

    # Multi-tile grid (2 parallel steps) + batch padding path.
    B2 = 300
    x2 = jax.random.normal(k_x, (B2, F_IN), jnp.float32)
    out2 = net_forward(x2, weight, bias, min_pallas_batch=0)
    jax.block_until_ready(out2)
    ref2 = x2 @ weight.T + bias
    assert out2.shape == (B2, F_OUT)
    assert jnp.allclose(out2, ref2, atol=1e-5, rtol=1e-5)

    # Small-batch XLA fast path (no pallas_call) for completeness.
    out3 = net_forward(x2, weight, bias)     # B2 < min_pallas_batch default
    assert jnp.allclose(out3, ref2, atol=1e-5, rtol=1e-5)

    print("KERNEL_OK")
</pallas_src>

<mosaic_0001>
module attributes {stable_mosaic.version = 11 : i64} {
  func.func @_linear_kernel(%arg0: i32, %arg1: memref<128x13xf32, #tpu.memory_space<vmem>>, %arg2: memref<1x13xf32, #tpu.memory_space<vmem>>, %arg3: memref<1x1xf32, #tpu.memory_space<smem>>, %arg4: memref<1x1x128xf32, #tpu.memory_space<vmem>>) attributes {dimension_semantics = [#tpu.dimension_semantics<parallel>], iteration_bounds = array<i64: 1>, scalar_prefetch = 0 : i64, scratch_operands = 0 : i64, tpu.core_type = #tpu.core_type<tc>, window_params = [{transform_indices = @transform_0, window_bounds = array<i64: 128, 13>}, {pipeline_mode = #tpu.pipeline_mode<synchronous>, transform_indices = @transform_1, window_bounds = array<i64: 1, 13>}, {transform_indices = @transform_2, window_bounds = array<i64: 1, 1>}, {transform_indices = @transform_3, window_bounds = array<i64: 1, 1, 128>}]} {
    %c0 = arith.constant 0 : index
    %c0_0 = arith.constant 0 : index
    %0 = vector.load %arg2[%c0, %c0_0] : memref<1x13xf32, #tpu.memory_space<vmem>>, vector<1x13xf32>
    %c0_1 = arith.constant 0 : index
    %c0_2 = arith.constant 0 : index
    %1 = vector.load %arg1[%c0_1, %c0_2] : memref<128x13xf32, #tpu.memory_space<vmem>>, vector<128x13xf32>
    %cst = arith.constant dense<0.000000e+00> : vector<1x128xf32>
    %2 = tpu.matmul %0, %1, %cst {dimension_numbers = #tpu.dot_dimension_numbers<[1], [1], [0], [0], [0, 0, 1, 0], [], []>} : vector<1x13xf32>, vector<128x13xf32>, vector<1x128xf32> -> vector<1x128xf32>
    %c0_3 = arith.constant 0 : index
    %c0_4 = arith.constant 0 : index
    %3 = memref.load %arg3[%c0_3, %c0_4] : memref<1x1xf32, #tpu.memory_space<smem>>
    %4 = vector.broadcast %3 : f32 to vector<1x128xf32>
    %5 = arith.addf %2, %4 : vector<1x128xf32>
    %c0_5 = arith.constant 0 : index
    %c0_6 = arith.constant 0 : index
    %c0_7 = arith.constant 0 : index
    %6 = vector.load %arg4[%c0_5, %c0_6, %c0_7] : memref<1x1x128xf32, #tpu.memory_space<vmem>>, vector<1x1x128xf32>
    %7 = vector.shape_cast %6 : vector<1x1x128xf32> to vector<1x128xf32>
    %8 = vector.shape_cast %5 : vector<1x128xf32> to vector<1x1x128xf32>
    tpu.vector_store %arg4[%c0_5, %c0_6, %c0_7], %8 {strides = array<i32>} : memref<1x1x128xf32, #tpu.memory_space<vmem>>, vector<1x1x128xf32>,
    return
  }
  func.func @transform_0(%arg0: i32) -> (i32, i32) {
    %c0_i32 = arith.constant 0 : i32
    %c0_i32_0 = arith.constant 0 : i32
    return %arg0, %c0_i32 : i32, i32
  }
  func.func @transform_1(%arg0: i32) -> (i32, i32) {
    %c0_i32 = arith.constant 0 : i32
    %c0_i32_0 = arith.constant 0 : i32
    %c0_i32_1 = arith.constant 0 : i32
    return %c0_i32, %c0_i32_0 : i32, i32
  }
  func.func @transform_2(%arg0: i32) -> (i32, i32) {
    %c0_i32 = arith.constant 0 : i32
    %c0_i32_0 = arith.constant 0 : i32
    %c0_i32_1 = arith.constant 0 : i32
    return %c0_i32, %c0_i32_0 : i32, i32
  }
  func.func @transform_3(%arg0: i32) -> (i32, i32, i32) {
    %c0_i32 = arith.constant 0 : i32
    %c0_i32_0 = arith.constant 0 : i32
    %c0_i32_1 = arith.constant 0 : i32
    return %arg0, %c0_i32, %c0_i32_0 : i32, i32, i32
  }
}

</mosaic_0001>

<llo_original>
// kernel: tpu_custom_call.1
$region0: #{tpu_custom_call.1}
  #allocation0 [shape = 'u32[]', space=smem, size = 0x4, offset = 0x4, fixed_abs, tag = 'smem constant byte address 0x4 - core index']
  #allocation1 [shape = 'u32[72,128]{1,0:T(1,128)}', space=vmem, size = 0x9000, scoped, tag = 'internal scratch']
  #allocation2 [shape = 'f32[1,1]{1,0:T(1,128)S(6)}', space=smem, size = 0x200, scoped, tag = 'scoped memory for tpu_custom_call.1']
  %s0 = inlined_call_operand.vmem [shape: f32[128,13], index: 0, kind: input, shape index: {}]
  %s1 = inlined_call_operand.vmem [shape: f32[1,13], index: 1, kind: input, shape index: {}]
  %s2 = inlined_call_operand.<no memory space> [shape: f32[1,1], index: 2, kind: input, shape index: {}]
  %s3 = inlined_call_operand.hbm [shape: f32[1,1,128], index: 3, kind: output, shape index: {}]
  %s4 = sld [smem:[#allocation0]]
  $region22: #{tpu_custom_call.1} parent=0
    _
  %s6 = ssub.s32 1, %s4
  %s7 = scalar_select 0, %s6, %s4
  %8 = sst [smem:[#allocation2]] %s2
  $region1: #{tpu_custom_call.1} parent=0
    #allocation3 [shape = 'u8[512]{0}', space=vmem, size = 0x400, scoped, tag = 'output window, operand 0, single buffered']
    #allocation4 [shape = 's32[1]{0}', space=sflag, size = 0x4, scoped, tag = 'scoped memory for tpu_custom_call.1']
    %9 = vsyncpa [#allocation4], 0
    // Predicated region
    $region2: #{tpu_custom_call.1} parent=1 // pred_check
      _
    $region3: #{tpu_custom_call.1} parent=1 // pred_check_branch
      %11 = sbr.rel (0) target = $region5
    $region4: #{tpu_custom_call.1} parent=1 // pred_region
      _
    $region5: #{tpu_custom_call.1} parent=1 // pred_fallthru
      _
    // Predicated region
    $region6: #{tpu_custom_call.1} parent=1 // pred_check
      _
    $region7: #{tpu_custom_call.1} parent=1 // pred_check_branch
      %13 = sbr.rel (0) target = $region9
    $region8: #{tpu_custom_call.1} parent=1 // pred_region
      _
    $region9: #{tpu_custom_call.1} parent=1 // pred_fallthru
      _
    // Predicated region
    $region10: #{tpu_custom_call.1} parent=1 // pred_check
      _
    $region11: #{tpu_custom_call.1} parent=1 // pred_check_branch
      %15 = sbr.rel (0) target = $region13
    $region12: #{tpu_custom_call.1} parent=1 // pred_region
      _
    $region13: #{tpu_custom_call.1} parent=1 // pred_fallthru
      _
    %v16 = vld [vmem:[%s1] sm:$0x1]
    %v17 = vld [vmem:[%s0] sm:$0xff]
    %v18 = vld [vmem:[%s0 + $0x8] sm:$0xff]
    %v19 = vld [vmem:[%s0 + $0x10] sm:$0xff]
    %v20 = vld [vmem:[%s0 + $0x18] sm:$0xff]
    %v21 = vld [vmem:[%s0 + $0x20] sm:$0xff]
    %v22 = vld [vmem:[%s0 + $0x28] sm:$0xff]
    %v23 = vld [vmem:[%s0 + $0x30] sm:$0xff]
    %v24 = vld [vmem:[%s0 + $0x38] sm:$0xff]
    %v25 = vld [vmem:[%s0 + $0x40] sm:$0xff]
    %v26 = vld [vmem:[%s0 + $0x48] sm:$0xff]
    %v27 = vld [vmem:[%s0 + $0x50] sm:$0xff]
    %v28 = vld [vmem:[%s0 + $0x58] sm:$0xff]
    %v29 = vld [vmem:[%s0 + $0x60] sm:$0xff]
    %v30 = vld [vmem:[%s0 + $0x68] sm:$0xff]
    %v31 = vld [vmem:[%s0 + $0x70] sm:$0xff]
    %v32 = vld [vmem:[%s0 + $0x78] sm:$0xff]
    %s33 = sld [smem:[#allocation2]]
    %v34 = vstv %s33
    %vm35 = vcmask 105472
    %v37 = vsel %vm35, %v16, 0
    %v40 = vsel %vm35, %v17, 0
    %v43 = vsel %vm35, %v18, 0
    %v46 = vsel %vm35, %v19, 0
    %v49 = vsel %vm35, %v20, 0
    %v52 = vsel %vm35, %v21, 0
    %v55 = vsel %vm35, %v22, 0
    %v58 = vsel %vm35, %v23, 0
    %v61 = vsel %vm35, %v24, 0
    %v64 = vsel %vm35, %v25, 0
    %v67 = vsel %vm35, %v26, 0
    %v70 = vsel %vm35, %v27, 0
    %v73 = vsel %vm35, %v28, 0
    %v76 = vsel %vm35, %v29, 0
    %v79 = vsel %vm35, %v30, 0
    %v82 = vsel %vm35, %v31, 0
    %v85 = vsel %vm35, %v32, 0
    %87 = vmatpush.xpose.msra.mxu0 %v85
    %88 = vmatpush.xpose.msra.mxu0 %v82
    %89 = vmatpush.xpose.msra.mxu0 %v79
    %90 = vmatpush.xpose.msra.mxu0 %v76
    %91 = vmatpush.xpose.msra.mxu0 %v73
    %92 = vmatpush.xpose.msra.mxu0 %v70
    %93 = vmatpush.xpose.msra.mxu0 %v67
    %94 = vmatpush.xpose.msra.mxu0 %v64
    %95 = vmatpush.xpose.msra.mxu0 %v61
    %96 = vmatpush.xpose.msra.mxu0 %v58
    %97 = vmatpush.xpose.msra.mxu0 %v55
    %98 = vmatpush.xpose.msra.mxu0 %v52
    %99 = vmatpush.xpose.msra.mxu0 %v49
    %100 = vmatpush.xpose.msra.mxu0 %v46
    %101 = vmatpush.xpose.msra.mxu0 %v43
    %102 = vmatpush.xpose.msra.mxu0 %v40
    %103 = vmatmul.f32.gmra.mxu0 %v37
    %v104 = vpop.f32.mrf.mxu0
    %v105 = vadd.f32 %v34, %v104
    %106 = vdwg.mxu0
    %107 = vst [vmem:[#allocation3] sm:$0x1] %v105
    // Predicated region
    $region14: #{tpu_custom_call.1} parent=1 // pred_check
      _
    $region15: #{tpu_custom_call.1} parent=1 // pred_check_branch
      %109 = sbr.rel (0) target = $region17
    $region16: #{tpu_custom_call.1} parent=1 // pred_region
      %111 = vsyncadd [#allocation4], 0
      %s113 = sshll.u32 [#allocation3], 4
      %s114 = int_to_ptr.vmem [resolvable:$true] %s113
      %s115 = sshll.u32 %s3, 4
      %s116 = int_to_ptr.hbm [resolvable:$true] %s115
      %118 = dma.vmem_to_hbm [thread:$0]  %s114, 16, %s116, [#allocation4]
    $region17: #{tpu_custom_call.1} parent=1 // pred_fallthru
      _
    // Predicated region
    $region18: #{tpu_custom_call.1} parent=1 // pred_check
      _
    $region19: #{tpu_custom_call.1} parent=1 // pred_check_branch
      %120 = sbr.rel (0) target = $region21
    $region20: #{tpu_custom_call.1} parent=1 // pred_region
      %122 = dma.done [#allocation4], 16
    $region21: #{tpu_custom_call.1} parent=1 // pred_fallthru
      _
    %123 = vsyncpa [#allocation4], 1

</llo_original>
